<compile_context>
chip_gen: v7x
topology: tpu7x:2x2x1
jax: 0.10.0
libtpu: 0.0.40
codegen_flags: <defaults>
</compile_context>

<pallas_src>
import jax
import jax.numpy as jnp
import numpy as np
from jax.experimental import pallas as pl
from jax.experimental.pallas import tpu as pltpu


def _copy_kernel(x_ref, o_ref):
    # Identity copy of the current tile. With input_output_aliases the output
    # HBM buffer is the input buffer, so no extra HBM allocation is made.
    o_ref[...] = x_ref[...]


def _resolve_shape(total_elems, shape):
    """Resolve a single -1 in the target shape (PyTorch .view semantics)."""
    target = list(shape)
    neg_idx = None
    known = 1
    for i, s in enumerate(target):
        if s == -1:
            assert neg_idx is None, "only one -1 allowed"
            neg_idx = i
        else:
            known *= s
    if neg_idx is not None:
        assert total_elems % known == 0, "shape incompatible with input size"
        target[neg_idx] = total_elems // known
    else:
        assert known == total_elems, "shape incompatible with input size"
    return tuple(target)


def _choose_slab(total):
    """Pick a lane/sublane-dense 2D slab (rows, cols) with rows*cols == total.

    Prefer cols a large multiple of 128 (full lanes, unmasked vst) AND rows a
    multiple of 8 (full sublane packing of f32 vregs).
    """
    widths = (4096, 2048, 1024, 512, 256, 128)
    for cols in widths:
        if total % cols == 0 and (total // cols) % 8 == 0:
            return total // cols, cols
    for cols in widths:
        if total % cols == 0:
            return total // cols, cols
    # Ragged fallback: single row, full-array block (correct, just not
    # lane-optimal). Only hit when total is not a multiple of 128.
    return 1, total


def _choose_tile_rows(rows, cols, itemsize, max_tile_bytes=2 * 1024 * 1024):
    """Largest row-tile (multiple of 8, divides rows) with <= ~2 MiB per buffer.

    2 MiB/buffer keeps in+out double buffers well under v7x's 32 MiB scoped
    VMEM default while keeping the grid-step count (0.35 us each) low.
    """
    if rows * cols * itemsize <= max_tile_bytes or rows % 8 != 0:
        # Full-dim block is always legal w.r.t. the (8,128) tiling rule.
        # TODO(synk): for very large ragged (rows % 8 != 0) inputs this falls
        # back to a single full-array block; tile along cols instead if needed.
        return rows
    budget = max(8, (max_tile_bytes // (cols * itemsize)) // 8 * 8)
    for tr in range(min(budget, rows), 7, -8):
        if rows % tr == 0:
            return tr
    return rows


def pallas_view(x, *shape):
    """Equivalent of torch.Tensor.view(*shape) for a contiguous tensor.

    NOTE: in a real model this op should simply be `jnp.reshape(x, target)`
    (metadata-only). The Pallas kernel below is kept as the explicit
    materialization path, made as cheap as possible (aliased, pipelined,
    lane-dense copy).
    """
    target = _resolve_shape(int(x.size), shape)
    total = int(x.size)
    if total == 0:
        return jnp.reshape(x, target)

    rows, cols = _choose_slab(total)
    flat = jnp.reshape(x, (rows, cols))  # metadata-only glue
    itemsize = jnp.dtype(flat.dtype).itemsize

    tr = _choose_tile_rows(rows, cols, itemsize)
    grid = (rows // tr,)

    out2d = pl.pallas_call(
        _copy_kernel,
        out_shape=jax.ShapeDtypeStruct((rows, cols), flat.dtype),
        grid=grid,
        in_specs=[
            pl.BlockSpec((tr, cols), lambda i: (i, 0),
                         memory_space=pltpu.MemorySpace.VMEM)
        ],
        out_specs=pl.BlockSpec((tr, cols), lambda i: (i, 0),
                               memory_space=pltpu.MemorySpace.VMEM),
        # Output aliases the input buffer: no second HBM allocation for the
        # "viewed" tensor (XLA inserts a copy only if the operand cannot
        # legally be aliased, e.g. an undonated parameter).
        input_output_aliases={0: 0},
        compiler_params=pltpu.CompilerParams(
            dimension_semantics=("parallel",)),
        cost_estimate=pl.CostEstimate(
            flops=0,
            transcendentals=0,
            bytes_accessed=2 * total * itemsize),
    )(flat)

    # Final reshape to the requested view shape (metadata only).
    return jnp.reshape(out2d, target)


if __name__ == "__main__":
    key = jax.random.PRNGKey(0)
    # NCHW input, as used right before the classifier in quan_resnet_cifar:
    # View(x.size(0), -1)
    x = jax.random.normal(key, (2, 4, 16, 16), dtype=jnp.float32)

    view_fn = jax.jit(lambda inp: pallas_view(inp, inp.shape[0], -1))
    y = jax.block_until_ready(view_fn(x))

    # Reference: plain reshape (identical semantics to torch .view on a
    # contiguous tensor).
    ref = jnp.reshape(x, (x.shape[0], -1))

    assert y.shape == (2, 4 * 16 * 16), y.shape
    assert y.dtype == x.dtype
    np.testing.assert_array_equal(np.asarray(y), np.asarray(ref))

    print("KERNEL_OK")
</pallas_src>

<mosaic_0001>
module attributes {stable_mosaic.version = 11 : i64} {
  func.func @_copy_kernel(%arg0: i32, %arg1: memref<8x256xf32, #tpu.memory_space<vmem>>, %arg2: memref<8x256xf32, #tpu.memory_space<vmem>>) attributes {dimension_semantics = [#tpu.dimension_semantics<parallel>], iteration_bounds = array<i64: 1>, scalar_prefetch = 0 : i64, scratch_operands = 0 : i64, tpu.core_type = #tpu.core_type<tc>, window_params = [{transform_indices = @transform_0, window_bounds = array<i64: 8, 256>}, {transform_indices = @transform_1, window_bounds = array<i64: 8, 256>}]} {
    %c0 = arith.constant 0 : index
    %c0_0 = arith.constant 0 : index
    %0 = vector.load %arg1[%c0, %c0_0] : memref<8x256xf32, #tpu.memory_space<vmem>>, vector<8x256xf32>
    %c0_1 = arith.constant 0 : index
    %c0_2 = arith.constant 0 : index
    %1 = vector.load %arg2[%c0_1, %c0_2] : memref<8x256xf32, #tpu.memory_space<vmem>>, vector<8x256xf32>
    tpu.vector_store %arg2[%c0_1, %c0_2], %0 {strides = array<i32>} : memref<8x256xf32, #tpu.memory_space<vmem>>, vector<8x256xf32>,
    return
  }
  func.func @transform_0(%arg0: i32) -> (i32, i32) {
    %c0_i32 = arith.constant 0 : i32
    %c0_i32_0 = arith.constant 0 : i32
    return %arg0, %c0_i32 : i32, i32
  }
  func.func @transform_1(%arg0: i32) -> (i32, i32) {
    %c0_i32 = arith.constant 0 : i32
    %c0_i32_0 = arith.constant 0 : i32
    return %arg0, %c0_i32 : i32, i32
  }
}

</mosaic_0001>

<llo_original>
// kernel: _lambda_.1
$region0: #{_lambda_.1}
  #allocation0 [shape = 'u32[]', space=smem, size = 0x4, offset = 0x4, fixed_abs, tag = 'smem constant byte address 0x4 - core index']
  #allocation1 [shape = 'u32[144,128]{1,0:T(1,128)}', space=vmem, size = 0x12000, scoped, tag = 'internal scratch']
  %s0 = inlined_call_operand.vmem [shape: f32[8,256], index: 0, kind: input, shape index: {}, may-alias: {0,1}]
  %s1 = inlined_call_operand.vmem [shape: f32[8,256], index: 1, kind: output, shape index: {}, may-alias: {0,1}]
  %s2 = sld [smem:[#allocation0]]
  $region14: #{_lambda_.1} parent=0
    _
  %s4 = ssub.s32 1, %s2
  %s5 = scalar_select 0, %s4, %s2
  // Predicated region
  $region2: #{_lambda_.1} parent=0 // pred_check
    _
  $region3: #{_lambda_.1} parent=0 // pred_check_branch
    %7 = sbr.rel (0) target = $region5
  $region4: #{_lambda_.1} parent=0 // pred_region
    _
  $region5: #{_lambda_.1} parent=0 // pred_fallthru
    _
  %v8 = vld [vmem:[%s0] sm:$0xff]
  %v9 = vld [vmem:[%s0 + $0x8] sm:$0xff]
  %10 = vst [vmem:[%s1] sm:$0xff] %v8
  %11 = vst [vmem:[%s1 + $0x8] sm:$0xff] %v9
  // Predicated region
  $region6: #{_lambda_.1} parent=0 // pred_check
    _
  $region7: #{_lambda_.1} parent=0 // pred_check_branch
    %13 = sbr.rel (0) target = $region9
  $region8: #{_lambda_.1} parent=0 // pred_region
    _
  $region9: #{_lambda_.1} parent=0 // pred_fallthru
    _
  // Predicated region
  $region10: #{_lambda_.1} parent=0 // pred_check
    _
  $region11: #{_lambda_.1} parent=0 // pred_check_branch
    %15 = sbr.rel (0) target = $region13
  $region12: #{_lambda_.1} parent=0 // pred_region
    _
  $region13: #{_lambda_.1} parent=0 // pred_fallthru
    _

</llo_original>
